<compile_context>
chip_gen: v7x
topology: tpu7x:2x2x1
jax: 0.10.0
libtpu: 0.0.40
codegen_flags: <defaults>
</compile_context>

<pallas_src>
import jax
import jax.numpy as jnp
from jax.experimental import pallas as pl
from jax.experimental.pallas import tpu as pltpu


def _film_kernel(x_ref, scale_ref, shift_ref, o_ref):
    # Pure VPU broadcast mul-add on a lane-dense block; kernel is HBM-bound.
    o_ref[...] = x_ref[...] * scale_ref[...] + shift_ref[...]


def _sublane(dtype):
    # Sublane packing granularity: f32 -> 8, bf16 -> 16, int8 -> 32.
    return 32 // jnp.dtype(dtype).itemsize


def _vmem_limit_bytes():
    # Generation-aware scoped-VMEM limit: ~3/4 of physical VMEM, capped at 96 MiB
    # (v5e/v6e: 128 MiB physical -> 96 MiB; v7x: 64 MiB physical -> 48 MiB).
    try:
        cap = int(pltpu.get_tpu_info().vmem_capacity_bytes)
    except Exception:
        cap = 64 << 20  # conservative fallback: assume the smallest (v7x) VMEM
    return int(min(cap * 3 // 4, 96 << 20))


def _row_tile(rows, lane, itemsize, sublane, target_block_bytes=4 << 20, min_steps=2):
    """Pick a row-tile TM (multiple of `sublane`, or == rows when rows < sublane)
    so that the (TM, lane) block is ~target_block_bytes, while keeping at least
    `min_steps` grid steps when possible (so both v7x TensorCores get work)."""
    if rows <= sublane:
        return rows
    max_rows = max(sublane,
                   (target_block_bytes // max(1, lane * itemsize)) // sublane * sublane)
    tm = min((rows // sublane) * sublane, max_rows)
    while pl.cdiv(rows, tm) < min_steps and tm > sublane:
        tm = max(sublane, (tm // 2) // sublane * sublane)
    return tm


def film_conv(x, scales, shifts, task_labels, num_samples):
    """conv=True path. x: (num_samples*B, width, H, W) NCHW."""
    N, C, H, W = x.shape
    B = task_labels.shape[0]
    assert N == num_samples * B, "x batch dim must be num_samples * len(task_labels)"
    L = H * W
    R = N * C
    dt = x.dtype
    itemsize = jnp.dtype(dt).itemsize

    # F.embedding gather (glue, plain JAX): (B, C)
    scale_bc = jnp.take(scales, task_labels, axis=0).astype(dt)
    shift_bc = jnp.take(shifts, task_labels, axis=0).astype(dt)
    # .view(-1, C, 1, 1).repeat(num_samples, 1, 1, 1): row (s*B+b)*C + c -> scale_bc[b, c].
    # Tiny (R, 1) column (1/L of x's bytes) so the kernel stays a pure broadcast mul-add.
    scale_col = jnp.broadcast_to(scale_bc[None], (num_samples, B, C)).reshape(R, 1)
    shift_col = jnp.broadcast_to(shift_bc[None], (num_samples, B, C)).reshape(R, 1)

    # Lane-dense 2-D view: rows = N*C, lanes = H*W (free reshape, contiguous).
    x2 = x.reshape(R, L)

    sub = _sublane(dt)
    tm = _row_tile(R, L, itemsize, sub)
    grid = (pl.cdiv(R, tm),)

    out = pl.pallas_call(
        _film_kernel,
        out_shape=jax.ShapeDtypeStruct((R, L), dt),
        grid_spec=pltpu.PrefetchScalarGridSpec(
            num_scalar_prefetch=0,
            grid=grid,
            in_specs=[
                pl.BlockSpec((tm, L), lambda i: (i, 0)),
                pl.BlockSpec((tm, 1), lambda i: (i, 0)),
                pl.BlockSpec((tm, 1), lambda i: (i, 0)),
            ],
            out_specs=pl.BlockSpec((tm, L), lambda i: (i, 0)),
        ),
        compiler_params=pltpu.CompilerParams(
            dimension_semantics=("parallel",),
            vmem_limit_bytes=_vmem_limit_bytes(),
        ),
    )(x2, scale_col, shift_col)
    return out.reshape(N, C, H, W)


def film_dense(x, scales, shifts, task_labels, num_samples=None):
    """conv=False path. x: (num_samples, B, width)."""
    del num_samples  # x already carries the sample dim; broadcast over it.
    S, B, C = x.shape
    L = B * C
    dt = x.dtype
    itemsize = jnp.dtype(dt).itemsize

    # Lane axis = B*C (not just C); scale/shift are one grid-resident row.
    scale_row = jnp.take(scales, task_labels, axis=0).astype(dt).reshape(1, L)
    shift_row = jnp.take(shifts, task_labels, axis=0).astype(dt).reshape(1, L)
    x2 = x.reshape(S, L)

    sub = _sublane(dt)
    tm = _row_tile(S, L, itemsize, sub)
    grid = (pl.cdiv(S, tm),)  # tiny inputs collapse to a single-block call

    out = pl.pallas_call(
        _film_kernel,
        out_shape=jax.ShapeDtypeStruct((S, L), dt),
        grid_spec=pltpu.PrefetchScalarGridSpec(
            num_scalar_prefetch=0,
            grid=grid,
            in_specs=[
                pl.BlockSpec((tm, L), lambda i: (i, 0)),
                pl.BlockSpec((1, L), lambda i: (0, 0)),  # resident: DMA'd once
                pl.BlockSpec((1, L), lambda i: (0, 0)),
            ],
            out_specs=pl.BlockSpec((tm, L), lambda i: (i, 0)),
        ),
        compiler_params=pltpu.CompilerParams(
            dimension_semantics=("parallel",),
            vmem_limit_bytes=_vmem_limit_bytes(),
        ),
    )(x2, scale_row, shift_row)
    return out.reshape(S, B, C)


if __name__ == "__main__":
    key = jax.random.PRNGKey(0)
    tasks, width = 3, 8
    num_samples, batch = 2, 2
    H = W = 16
    k1, k2, k3, k4 = jax.random.split(key, 4)

    # reset_parameters() initializes scales=1.0, shifts=0.0 (identity FiLM); we use
    # deterministic random values here so the kernel result is non-trivial.
    scales = jax.random.normal(k1, (tasks, width), jnp.float32) + 1.0
    shifts = jax.random.normal(k2, (tasks, width), jnp.float32) * 0.1
    task_labels = jnp.array([0, 2], dtype=jnp.int32)

    # --- conv=True mode ---
    x_conv = jax.random.normal(k3, (num_samples * batch, width, H, W), jnp.float32)
    out_conv = jax.block_until_ready(
        film_conv(x_conv, scales, shifts, task_labels, num_samples)
    )
    sc = jnp.tile(jnp.take(scales, task_labels, 0), (num_samples, 1))[:, :, None, None]
    sh = jnp.tile(jnp.take(shifts, task_labels, 0), (num_samples, 1))[:, :, None, None]
    ref_conv = x_conv * sc + sh
    assert jnp.allclose(out_conv, ref_conv, atol=1e-5), "conv-mode mismatch"

    # --- conv=False mode ---
    x_dense = jax.random.normal(k4, (num_samples, batch, width), jnp.float32)
    out_dense = jax.block_until_ready(
        film_dense(x_dense, scales, shifts, task_labels, num_samples)
    )
    ref_dense = (
        x_dense * jnp.take(scales, task_labels, 0)[None]
        + jnp.take(shifts, task_labels, 0)[None]
    )
    assert jnp.allclose(out_dense, ref_dense, atol=1e-5), "dense-mode mismatch"

    print("KERNEL_OK")
</pallas_src>

<mosaic_0001>
module attributes {stable_mosaic.version = 11 : i64} {
  func.func @_film_kernel(%arg0: i32, %arg1: memref<16x256xf32, #tpu.memory_space<vmem>>, %arg2: memref<16x1xf32, #tpu.memory_space<vmem>>, %arg3: memref<16x1xf32, #tpu.memory_space<vmem>>, %arg4: memref<16x256xf32, #tpu.memory_space<vmem>>) attributes {dimension_semantics = [#tpu.dimension_semantics<parallel>], iteration_bounds = array<i64: 2>, scalar_prefetch = 0 : i64, scratch_operands = 0 : i64, tpu.core_type = #tpu.core_type<tc>, window_params = [{transform_indices = @transform_0, window_bounds = array<i64: 16, 256>}, {transform_indices = @transform_1, window_bounds = array<i64: 16, 1>}, {transform_indices = @transform_2, window_bounds = array<i64: 16, 1>}, {transform_indices = @transform_3, window_bounds = array<i64: 16, 256>}]} {
    %c0 = arith.constant 0 : index
    %c0_0 = arith.constant 0 : index
    %0 = vector.load %arg1[%c0, %c0_0] : memref<16x256xf32, #tpu.memory_space<vmem>>, vector<16x256xf32>
    %c0_1 = arith.constant 0 : index
    %c0_2 = arith.constant 0 : index
    %1 = vector.load %arg2[%c0_1, %c0_2] : memref<16x1xf32, #tpu.memory_space<vmem>>, vector<16x1xf32>
    %2 = vector.broadcast %1 : vector<16x1xf32> to vector<16x256xf32>
    %3 = arith.mulf %0, %2 : vector<16x256xf32>
    %c0_3 = arith.constant 0 : index
    %c0_4 = arith.constant 0 : index
    %4 = vector.load %arg3[%c0_3, %c0_4] : memref<16x1xf32, #tpu.memory_space<vmem>>, vector<16x1xf32>
    %5 = vector.broadcast %4 : vector<16x1xf32> to vector<16x256xf32>
    %6 = arith.addf %3, %5 : vector<16x256xf32>
    %c0_5 = arith.constant 0 : index
    %c0_6 = arith.constant 0 : index
    %7 = vector.load %arg4[%c0_5, %c0_6] : memref<16x256xf32, #tpu.memory_space<vmem>>, vector<16x256xf32>
    tpu.vector_store %arg4[%c0_5, %c0_6], %6 {strides = array<i32>} : memref<16x256xf32, #tpu.memory_space<vmem>>, vector<16x256xf32>,
    return
  }
  func.func @transform_0(%arg0: i32) -> (i32, i32) {
    %c0_i32 = arith.constant 0 : i32
    %c0_i32_0 = arith.constant 0 : i32
    return %arg0, %c0_i32 : i32, i32
  }
  func.func @transform_1(%arg0: i32) -> (i32, i32) {
    %c0_i32 = arith.constant 0 : i32
    %c0_i32_0 = arith.constant 0 : i32
    return %arg0, %c0_i32 : i32, i32
  }
  func.func @transform_2(%arg0: i32) -> (i32, i32) {
    %c0_i32 = arith.constant 0 : i32
    %c0_i32_0 = arith.constant 0 : i32
    return %arg0, %c0_i32 : i32, i32
  }
  func.func @transform_3(%arg0: i32) -> (i32, i32) {
    %c0_i32 = arith.constant 0 : i32
    %c0_i32_0 = arith.constant 0 : i32
    return %arg0, %c0_i32 : i32, i32
  }
}

</mosaic_0001>

<llo_original>
// kernel: tpu_custom_call.1
$region0: #{tpu_custom_call.1}
  #allocation0 [shape = 'u32[]', space=smem, size = 0x4, offset = 0x4, fixed_abs, tag = 'smem constant byte address 0x4 - core index']
  #allocation1 [shape = 'u32[144,128]{1,0:T(1,128)}', space=vmem, size = 0x12000, scoped, tag = 'internal scratch']
  %s0 = inlined_call_operand.vmem [shape: f32[32,256], index: 0, kind: input, shape index: {}]
  %s1 = inlined_call_operand.vmem [shape: f32[32,1], index: 1, kind: input, shape index: {}]
  %s2 = inlined_call_operand.vmem [shape: f32[32,1], index: 2, kind: input, shape index: {}]
  %s3 = inlined_call_operand.hbm [shape: f32[32,256], index: 3, kind: output, shape index: {}]
  %s4 = sld [smem:[#allocation0]]
  $region45: #{tpu_custom_call.1} parent=0
    _
  %s6 = ssub.s32 1, %s4
  %s7 = scalar_select 0, %s6, %s4
  $region1: #{tpu_custom_call.1} parent=0
    #allocation2 [shape = 'u8[32768]{0}', space=vmem, size = 0x8000, scoped, tag = 'output window, operand 0']
    #allocation3 [shape = 's32[2]{0}', space=sflag, size = 0x8, scoped, tag = 'scoped memory for tpu_custom_call.1']
    %8 = vsyncpa [#allocation3], 0
    %s9 = scalar_lea.sflag [#allocation3], 1
    %10 = vsyncpa %s9, 0
    loop: start=0, step=1, limit=4
    $region2: #{tpu_custom_call.1} parent=1 // loop_pre_header
      _
    $region3: #{tpu_custom_call.1} parent=1 // loop_header
      %s12 = sphi 0, %s16
      %p13 = scmp.ge.s32.totalorder %s12, 4
      %s22 = sphi 0, %s24
      %s25 = sphi 0, %s22
      %s26 = sphi 0, %s25
      %s42 = sphi 0, %s26
      %s48 = sphi 0, %s50
      %s51 = sphi 0, %s48
      %s52 = sphi 0, %s51
      %s68 = sphi 0, %s52
      %s74 = sphi 0, %s76
      %s77 = sphi 0, %s74
      %s78 = sphi 0, %s77
      %s94 = sphi 0, %s78
      %s100 = sphi 0, %s102
      %s103 = sphi 0, %s100
      %s104 = sphi 0, %s103
      %s120 = sphi 0, %s104
    $region4: #{tpu_custom_call.1} parent=1 // loop_header_branch
      %15 = sbr.rel (%p13) target = $region8
    $region5: #{tpu_custom_call.1} parent=1 // loop_body
      %s17 = ssub.s32 %s12, 1
      %s18 = ssub.s32 %s12, 2
      %s19 = sadd.s32 %s12, 1
      %s20 = ssub.s32 %s12, %s19
      %p21 = scmp.eq.s32.totalorder %s20, 0
      %s23 = sadd.s32 %s22, 1
      %s24 = scalar_select %p21, %s22, %s23
      %p27 = pneg %p21
      %p28 = scmp.eq.s32.totalorder %s12, 1
      %p29 = por %p27, %p28
      %p30 = scmp.ne.s32.totalorder %s22, %s25
      %p31 = scmp.eq.s32.totalorder %s12, 0
      %p32 = por %p30, %p31
      %p33 = scmp.ne.s32.totalorder %s22, %s25
      %p34 = scmp.eq.s32.totalorder %s17, 1
      %p35 = por %p33, %p34
      %p36 = scmp.ne.s32.totalorder %s25, %s26
      %p37 = scmp.eq.s32.totalorder %s17, 0
      %p38 = por %p36, %p37
      %p39 = scmp.ne.s32.totalorder %s25, %s26
      %p40 = scmp.eq.s32.totalorder %s18, 1
      %p41 = por %p39, %p40
      %p43 = scmp.ne.s32.totalorder %s26, %s42
      %p44 = scmp.eq.s32.totalorder %s18, 0
      %p45 = por %p43, %p44
      %s46 = ssub.s32 %s12, %s19
      %p47 = scmp.eq.s32.totalorder %s46, 0
      %s49 = sadd.s32 %s48, 1
      %s50 = scalar_select %p47, %s48, %s49
      %p53 = pneg %p47
      %p54 = scmp.eq.s32.totalorder %s12, 1
      %p55 = por %p53, %p54
      %p56 = scmp.ne.s32.totalorder %s48, %s51
      %p57 = scmp.eq.s32.totalorder %s12, 0
      %p58 = por %p56, %p57
      %p59 = scmp.ne.s32.totalorder %s48, %s51
      %p60 = scmp.eq.s32.totalorder %s17, 1
      %p61 = por %p59, %p60
      %p62 = scmp.ne.s32.totalorder %s51, %s52
      %p63 = scmp.eq.s32.totalorder %s17, 0
      %p64 = por %p62, %p63
      %p65 = scmp.ne.s32.totalorder %s51, %s52
      %p66 = scmp.eq.s32.totalorder %s18, 1
      %p67 = por %p65, %p66
      %p69 = scmp.ne.s32.totalorder %s52, %s68
      %p70 = scmp.eq.s32.totalorder %s18, 0
      %p71 = por %p69, %p70
      %s72 = ssub.s32 %s12, %s19
      %p73 = scmp.eq.s32.totalorder %s72, 0
      %s75 = sadd.s32 %s74, 1
      %s76 = scalar_select %p73, %s74, %s75
      %p79 = pneg %p73
      %p80 = scmp.eq.s32.totalorder %s12, 1
      %p81 = por %p79, %p80
      %p82 = scmp.ne.s32.totalorder %s74, %s77
      %p83 = scmp.eq.s32.totalorder %s12, 0
      %p84 = por %p82, %p83
      %p85 = scmp.ne.s32.totalorder %s74, %s77
      %p86 = scmp.eq.s32.totalorder %s17, 1
      %p87 = por %p85, %p86
      %p88 = scmp.ne.s32.totalorder %s77, %s78
      %p89 = scmp.eq.s32.totalorder %s17, 0
      %p90 = por %p88, %p89
      %p91 = scmp.ne.s32.totalorder %s77, %s78
      %p92 = scmp.eq.s32.totalorder %s18, 1
      %p93 = por %p91, %p92
      %p95 = scmp.ne.s32.totalorder %s78, %s94
      %p96 = scmp.eq.s32.totalorder %s18, 0
      %p97 = por %p95, %p96
      %s98 = ssub.s32 %s12, %s19
      %p99 = scmp.eq.s32.totalorder %s98, 0
      %s101 = sadd.s32 %s100, 1
      %s102 = scalar_select %p99, %s100, %s101
      %p105 = pneg %p99
      %p106 = scmp.eq.s32.totalorder %s12, 1
      %p107 = por %p105, %p106
      %p108 = scmp.ne.s32.totalorder %s100, %s103
      %p109 = scmp.eq.s32.totalorder %s12, 0
      %p110 = por %p108, %p109
      %p111 = scmp.ne.s32.totalorder %s100, %s103
      %p112 = scmp.eq.s32.totalorder %s17, 1
      %p113 = por %p111, %p112
      %p114 = scmp.ne.s32.totalorder %s103, %s104
      %p115 = scmp.eq.s32.totalorder %s17, 0
      %p116 = por %p114, %p115
      %p117 = scmp.ne.s32.totalorder %s103, %s104
      %p118 = scmp.eq.s32.totalorder %s18, 1
      %p119 = por %p117, %p118
      %p121 = scmp.ne.s32.totalorder %s104, %s120
      %p122 = scmp.eq.s32.totalorder %s18, 0
      %p123 = por %p121, %p122
      %p124 = scmp.le.s32.totalorder 1, %s12
      %p125 = scmp.lt.s32.totalorder %s12, 3
      %p126 = pnand %p124, %p125
      %p127 = pneg %p126
      // Predicated region
      $region9: #{tpu_custom_call.1} parent=5 // pred_check
        _
      $region10: #{tpu_custom_call.1} parent=5 // pred_check_branch
        %129 = sbr.rel (%p126) target = $region12
      $region11: #{tpu_custom_call.1} parent=5 // pred_region
        %s130 = ssub.s32 %s12, 1
      $region12: #{tpu_custom_call.1} parent=5 // pred_fallthru
        _
      %p131 = scmp.lt.s32.totalorder %s12, 2
      // Predicated region
      $region13: #{tpu_custom_call.1} parent=5 // pred_check
        %p132 = pneg %p131
      $region14: #{tpu_custom_call.1} parent=5 // pred_check_branch
        %134 = sbr.rel (%p132) target = $region16
      $region15: #{tpu_custom_call.1} parent=5 // pred_region
        // Predicated region
        $region17: #{tpu_custom_call.1} parent=15 // pred_check
          %p135 = pneg %p32
        $region18: #{tpu_custom_call.1} parent=15 // pred_check_branch
          %137 = sbr.rel (%p135) target = $region20
        $region19: #{tpu_custom_call.1} parent=15 // pred_region
          %s138 = smul.u32 2, %s12
          %p139 = scmp.lt.s32.totalorder %s138, 3
          %s140 = scalar_select %p139, %s138, 3
          %s141 = smul.addr %s140, 2
          %s142 = smul.addr %s141, 8
          %s143 = scalar_lea.vmem %s0, %s142
          %s144 = smul.u32 2, %s12
        $region20: #{tpu_custom_call.1} parent=15 // pred_fallthru
          _
        // Predicated region
        $region21: #{tpu_custom_call.1} parent=15 // pred_check
          %p145 = pneg %p58
        $region22: #{tpu_custom_call.1} parent=15 // pred_check_branch
          %147 = sbr.rel (%p145) target = $region24
        $region23: #{tpu_custom_call.1} parent=15 // pred_region
          %s148 = smul.u32 2, %s12
          %p149 = scmp.lt.s32.totalorder %s148, 3
          %s150 = scalar_select %p149, %s148, 3
          %s151 = smul.addr %s150, 8
          %s152 = scalar_lea.vmem %s1, %s151
          %s153 = smul.u32 2, %s12
        $region24: #{tpu_custom_call.1} parent=15 // pred_fallthru
          _
        // Predicated region
        $region25: #{tpu_custom_call.1} parent=15 // pred_check
          %p154 = pneg %p84
        $region26: #{tpu_custom_call.1} parent=15 // pred_check_branch
          %156 = sbr.rel (%p154) target = $region28
        $region27: #{tpu_custom_call.1} parent=15 // pred_region
          %s157 = smul.u32 2, %s12
          %p158 = scmp.lt.s32.totalorder %s157, 3
          %s159 = scalar_select %p158, %s157, 3
          %s160 = smul.addr %s159, 8
          %s161 = scalar_lea.vmem %s2, %s160
          %s162 = smul.u32 2, %s12
        $region28: #{tpu_custom_call.1} parent=15 // pred_fallthru
          _
      $region16: #{tpu_custom_call.1} parent=5 // pred_fallthru
        _
      %p163 = scmp.le.s32.totalorder 1, %s12
      %p164 = scmp.lt.s32.totalorder %s12, 3
      %p165 = pnand %p163, %p164
      %p166 = pneg %p165
      // Predicated region
      $region29: #{tpu_custom_call.1} parent=5 // pred_check
        _
      $region30: #{tpu_custom_call.1} parent=5 // pred_check_branch
        %168 = sbr.rel (%p165) target = $region32
      $region31: #{tpu_custom_call.1} parent=5 // pred_region
        %s169 = ssub.s32 %s12, 1
        %s170 = smul.u32 2, %s17
        %p171 = scmp.lt.s32.totalorder %s170, 3
        %s172 = scalar_select %p171, %s170, 3
        %s173 = smul.addr %s172, 2
        %s174 = smul.addr %s173, 8
        %s175 = scalar_lea.vmem %s0, %s174
        %p176 = pneg %p38
        %p177 = pneg %p35
        %s178 = smul.u32 2, %s17
        %p179 = scmp.lt.s32.totalorder %s178, 3
        %s180 = scalar_select %p179, %s178, 3
        %s181 = smul.addr %s180, 8
        %s182 = scalar_lea.vmem %s1, %s181
        %p183 = pneg %p64
        %p184 = pneg %p61
        %s185 = smul.u32 2, %s17
        %p186 = scmp.lt.s32.totalorder %s185, 3
        %s187 = scalar_select %p186, %s185, 3
        %s188 = smul.addr %s187, 8
        %s189 = scalar_lea.vmem %s2, %s188
        %p190 = pneg %p90
        %p191 = pneg %p87
        %p192 = pneg %p116
        %p193 = pneg %p113
        %s194 = sand.u32 %s103, 1
        %s195 = scalar_lea.sflag [#allocation3], %s194
        %s196 = sand.u32 %s103, 1
        %s197 = smul.addr %s196, 32
        %s198 = scalar_lea.vmem [#allocation2], %s197
        %s199 = smul.u32 2, %s17
        %p200 = scmp.lt.s32.totalorder %s199, 3
        %s201 = scalar_select %p200, %s199, 3
        %s202 = smul.addr %s201, 2
        %s203 = smul.addr %s202, 8
        %s204 = scalar_lea.vmem %s0, %s203
        %s205 = smul.u32 2, %s17
        %s206 = smul.u32 2, %s17
        %p207 = scmp.lt.s32.totalorder %s206, 3
        %s208 = scalar_select %p207, %s206, 3
        %s209 = smul.addr %s208, 8
        %s210 = scalar_lea.vmem %s1, %s209
        %s211 = smul.u32 2, %s17
        %s212 = smul.u32 2, %s17
        %p213 = scmp.lt.s32.totalorder %s212, 3
        %s214 = scalar_select %p213, %s212, 3
        %s215 = smul.addr %s214, 8
        %s216 = scalar_lea.vmem %s2, %s215
        %s217 = smul.u32 2, %s17
        %s218 = smul.u32 2, %s17
        %v219 = vld [vmem:[%s204] sm:$0xff]
        %v220 = vld [vmem:[%s204 + $0x8] sm:$0xff]
        %v221 = vld [vmem:[%s204 + $0x10] sm:$0xff]
        %v222 = vld [vmem:[%s204 + $0x18] sm:$0xff]
        %v223 = vld [vmem:[%s210] sm:$0xff]
        %v224 = vld [vmem:[%s210 + $0x8] sm:$0xff]
        %226 = vset.pattern.permute.xlu0 0
        %227 = vperm.xlu0 %226, %v223
        %v228 = vpop.permute.xlu0 %227
        %231 = vset.pattern.permute.xlu0 0
        %232 = vperm.xlu0 %231, %v224
        %v233 = vpop.permute.xlu0 %232
        %v235 = vmul.f32 %v219, %v228
        %v236 = vmul.f32 %v220, %v228
        %v237 = vmul.f32 %v221, %v233
        %v238 = vmul.f32 %v222, %v233
        %v239 = vld [vmem:[%s216] sm:$0xff]
        %v240 = vld [vmem:[%s216 + $0x8] sm:$0xff]
        %242 = vset.pattern.permute.xlu0 0
        %243 = vperm.xlu0 %242, %v239
        %v244 = vpop.permute.xlu0 %243
        %247 = vset.pattern.permute.xlu0 0
        %248 = vperm.xlu0 %247, %v240
        %v249 = vpop.permute.xlu0 %248
        %v251 = vadd.f32 %v235, %v244
        %v252 = vadd.f32 %v236, %v244
        %v253 = vadd.f32 %v237, %v249
        %v254 = vadd.f32 %v238, %v249
        %255 = vst [vmem:[%s198] sm:$0xff] %v251
        %256 = vst [vmem:[%s198 + $0x8] sm:$0xff] %v252
        %257 = vst [vmem:[%s198 + $0x10] sm:$0xff] %v253
        %258 = vst [vmem:[%s198 + $0x18] sm:$0xff] %v254
        %s259 = sand.u32 %s103, 1
        %s260 = scalar_lea.sflag [#allocation3], %s259
        %s261 = sand.u32 %s103, 1
        %s262 = smul.addr %s261, 32
        %s263 = scalar_lea.vmem [#allocation2], %s262
        // Predicated region
        $region33: #{tpu_custom_call.1} parent=31 // pred_check
          %p264 = pneg %p113
        $region34: #{tpu_custom_call.1} parent=31 // pred_check_branch
          %266 = sbr.rel (%p264) target = $region36
        $region35: #{tpu_custom_call.1} parent=31 // pred_region
          %s267 = smul.u32 2, %s17
          %s269 = ssub.s32 512, 512
          %270 = vsyncadd %s260, %s269
          %s271 = smul.addr %s267, 2
          %s272 = smul.addr %s271, 128
          %s273 = scalar_lea.hbm %s3, %s272
          %s274 = sshll.u32 %s263, 4
          %s275 = int_to_ptr.vmem [resolvable:$true] %s274
          %280 = dma.vmem_to_hbm [thread:$0]  %s275, 512, %s273, %s260, 256, 256, 16
        $region36: #{tpu_custom_call.1} parent=31 // pred_fallthru
          _
      $region32: #{tpu_custom_call.1} parent=5 // pred_fallthru
        _
      %p281 = scmp.le.s32.totalorder 2, %s12
      // Predicated region
      $region37: #{tpu_custom_call.1} parent=5 // pred_check
        %p282 = pneg %p281
      $region38: #{tpu_custom_call.1} parent=5 // pred_check_branch
        %284 = sbr.rel (%p282) target = $region40
      $region39: #{tpu_custom_call.1} parent=5 // pred_region
        %s285 = ssub.s32 %s12, 2
        // Predicated region
        $region41: #{tpu_custom_call.1} parent=39 // pred_check
          %p286 = pneg %p119
        $region42: #{tpu_custom_call.1} parent=39 // pred_check_branch
          %288 = sbr.rel (%p286) target = $region44
        $region43: #{tpu_custom_call.1} parent=39 // pred_region
          %s289 = sand.u32 %s104, 1
          %s290 = scalar_lea.sflag [#allocation3], %s289
          %s291 = sand.u32 %s104, 1
          %s292 = smul.addr %s291, 32
          %s293 = scalar_lea.vmem [#allocation2], %s292
          %294 = dma.done %s290, 512
        $region44: #{tpu_custom_call.1} parent=39 // pred_fallthru
          _
      $region40: #{tpu_custom_call.1} parent=5 // pred_fallthru
        _
    $region6: #{tpu_custom_call.1} parent=1 // loop_footer
      %s16 = sadd.s32 1, %s12
    $region7: #{tpu_custom_call.1} parent=1 // loop_footer_branch
      %11 = sbr.rel target = $region3
    $region8: #{tpu_custom_call.1} parent=1 // loop_exit
      _
    %295 = vsyncpa [#allocation3], 1
    %s296 = scalar_lea.sflag [#allocation3], 1
    %297 = vsyncpa %s296, 1

</llo_original>
